<compile_context>
chip_gen: v5e
topology: v5e:2x2
jax: 0.10.0
libtpu: 0.0.40
codegen_flags: <defaults>
</compile_context>

<pallas_src>
import functools

import jax
import jax.numpy as jnp
from jax.experimental import pallas as pl
from jax.experimental.pallas import tpu as pltpu


def _group_norm_kernel(x_ref, w_ref, b_ref, gmat_ref, o_ref, *, eps):
    # x_ref: (Nb, C, HW); w_ref/b_ref: (1, C) f32;
    # gmat_ref: (C, C) f32, gmat[c, c'] = 1/(Cg*HW) if same group else 0.
    x = x_ref[...]
    xf = x.astype(jnp.float32)

    # Per-channel first/second moments over the spatial (lane) axis, f32 acc.
    row_s1 = jnp.sum(xf, axis=-1)          # (Nb, C)
    row_s2 = jnp.sum(xf * xf, axis=-1)     # (Nb, C)

    # Combine channels within each group and broadcast back to per-channel
    # via one tiny matmul (keeps everything lane/sublane friendly).
    gmat = gmat_ref[...]                                           # (C, C)
    mean_c = jnp.dot(row_s1, gmat, preferred_element_type=jnp.float32)  # (Nb, C)
    ex2_c = jnp.dot(row_s2, gmat, preferred_element_type=jnp.float32)   # (Nb, C)

    var_c = jnp.maximum(ex2_c - mean_c * mean_c, 0.0)
    inv_c = jax.lax.rsqrt(var_c + eps)                             # (Nb, C)

    w = w_ref[...]                                                 # (1, C) f32
    b = b_ref[...]                                                 # (1, C) f32
    scale = inv_c * w                                              # (Nb, C)
    shift = b - mean_c * scale                                     # (Nb, C)

    o_ref[...] = (xf * scale[:, :, None] + shift[:, :, None]).astype(o_ref.dtype)


def _pick_samples_per_block(n, bytes_per_sample, target_bytes=4 * 1024 * 1024):
    """Largest divisor of n whose block stays near target_bytes, keeping
    at least 2 grid steps (megacore balance) when n > 1."""
    cap = max(1, target_bytes // max(1, bytes_per_sample))
    if n > 1:
        cap = min(cap, max(1, n // 2))
    nb = 1
    for d in range(1, n + 1):
        if n % d == 0 and d <= cap:
            nb = d
    return nb


def group_norm_pallas(x, weight, bias, num_groups, eps=1e-5):
    """GroupNorm forward matching torch.nn.functional.group_norm.

    x: (N, C, H, W); weight, bias: (C,).
    """
    N, C, H, W = x.shape
    G = num_groups
    assert C % G == 0, f"channels {C} not divisible by num_groups {G}"
    Cg = C // G
    HW = H * W

    x_r = x.reshape(N, C, HW)
    w_r = weight.astype(jnp.float32).reshape(1, C)
    b_r = bias.astype(jnp.float32).reshape(1, C)

    # Same-group averaging matrix, pre-scaled by 1/(elements per group).
    gid = jnp.arange(C, dtype=jnp.int32) // Cg
    gmat = (gid[:, None] == gid[None, :]).astype(jnp.float32) / float(Cg * HW)

    nb = _pick_samples_per_block(N, C * HW * x.dtype.itemsize)
    grid = (N // nb,)

    out = pl.pallas_call(
        functools.partial(_group_norm_kernel, eps=eps),
        out_shape=jax.ShapeDtypeStruct((N, C, HW), x.dtype),
        grid_spec=pltpu.PrefetchScalarGridSpec(
            num_scalar_prefetch=0,
            grid=grid,
            in_specs=[
                pl.BlockSpec((nb, C, HW), lambda i: (i, 0, 0)),
                pl.BlockSpec((1, C), lambda i: (0, 0)),     # resident
                pl.BlockSpec((1, C), lambda i: (0, 0)),     # resident
                pl.BlockSpec((C, C), lambda i: (0, 0)),     # resident
            ],
            out_specs=pl.BlockSpec((nb, C, HW), lambda i: (i, 0, 0)),
        ),
        compiler_params=pltpu.CompilerParams(
            dimension_semantics=("parallel",),
            vmem_limit_bytes=48 * 1024 * 1024,
        ),
    )(x_r, w_r, b_r, gmat)

    return out.reshape(N, C, H, W)


class GroupNormPallas:
    """Mirror of the PyTorch GroupNorm module (forward only)."""

    def __init__(self, num_channels, num_groups=32, min_channels_per_group=4,
                 eps=1e-5, weight=None, bias=None):
        self.num_groups = min(num_groups, num_channels // min_channels_per_group)
        assert num_channels % self.num_groups == 0, (
            f"num_channels {num_channels} must be divisible by "
            f"num_groups {self.num_groups}")
        self.eps = eps
        self.weight = (jnp.ones((num_channels,), jnp.float32)
                       if weight is None else weight)
        self.bias = (jnp.zeros((num_channels,), jnp.float32)
                     if bias is None else bias)

    def __call__(self, x, N_views_xa=1):
        # Params are handed to the kernel in f32; the kernel computes all
        # statistics/affine math in f32 and casts the result to x.dtype.
        return group_norm_pallas(x, self.weight, self.bias,
                                 self.num_groups, self.eps)


def _group_norm_ref(x, weight, bias, num_groups, eps):
    # Plain-JAX reference for validation.
    N, C, H, W = x.shape
    G = num_groups
    xr = x.reshape(N, G, -1).astype(jnp.float32)
    mean = xr.mean(axis=-1, keepdims=True)
    var = ((xr - mean) ** 2).mean(axis=-1, keepdims=True)
    xn = ((xr - mean) / jnp.sqrt(var + eps)).reshape(N, C, H, W)
    w = weight.astype(jnp.float32)[None, :, None, None]
    b = bias.astype(jnp.float32)[None, :, None, None]
    return (xn * w + b).astype(x.dtype)


if __name__ == "__main__":
    key = jax.random.PRNGKey(0)
    kx, kw, kb = jax.random.split(key, 3)

    N, C, H, W = 2, 16, 16, 16
    x = jax.random.normal(kx, (N, C, H, W), dtype=jnp.float32)

    # Module __init__ uses ones/zeros; perturb deterministically so the
    # affine path is actually exercised.
    weight = jnp.ones((C,), jnp.float32) + 0.1 * jax.random.normal(kw, (C,))
    bias = jnp.zeros((C,), jnp.float32) + 0.1 * jax.random.normal(kb, (C,))

    gn = GroupNormPallas(num_channels=C, weight=weight, bias=bias)
    y = gn(x)
    y = jax.block_until_ready(y)

    y_ref = _group_norm_ref(x, weight, bias, gn.num_groups, gn.eps)
    assert y.shape == (N, C, H, W)
    assert jnp.allclose(y, y_ref, atol=1e-4, rtol=1e-4), (
        "mismatch vs reference, max abs err = "
        f"{float(jnp.max(jnp.abs(y - y_ref)))}")

    print("KERNEL_OK")
</pallas_src>

<mosaic_0001>
module attributes {stable_mosaic.version = 11 : i64} {
  func.func @_group_norm_kernel(%arg0: i32, %arg1: memref<1x16x256xf32, #tpu.memory_space<vmem>>, %arg2: memref<1x16xf32, #tpu.memory_space<vmem>>, %arg3: memref<1x16xf32, #tpu.memory_space<vmem>>, %arg4: memref<16x16xf32, #tpu.memory_space<vmem>>, %arg5: memref<1x16x256xf32, #tpu.memory_space<vmem>>) attributes {dimension_semantics = [#tpu.dimension_semantics<parallel>], iteration_bounds = array<i64: 2>, scalar_prefetch = 0 : i64, scratch_operands = 0 : i64, tpu.core_type = #tpu.core_type<tc>, window_params = [{transform_indices = @transform_0, window_bounds = array<i64: 1, 16, 256>}, {pipeline_mode = #tpu.pipeline_mode<synchronous>, transform_indices = @transform_1, window_bounds = array<i64: 1, 16>}, {pipeline_mode = #tpu.pipeline_mode<synchronous>, transform_indices = @transform_2, window_bounds = array<i64: 1, 16>}, {pipeline_mode = #tpu.pipeline_mode<synchronous>, transform_indices = @transform_3, window_bounds = array<i64: 16, 16>}, {transform_indices = @transform_4, window_bounds = array<i64: 1, 16, 256>}]} {
    %c0 = arith.constant 0 : index
    %c0_0 = arith.constant 0 : index
    %c0_1 = arith.constant 0 : index
    %0 = vector.load %arg1[%c0, %c0_0, %c0_1] : memref<1x16x256xf32, #tpu.memory_space<vmem>>, vector<1x16x256xf32>
    %cst = arith.constant dense<0.000000e+00> : vector<1x16xf32>
    %1 = vector.multi_reduction <add>, %0, %cst [2] : vector<1x16x256xf32> to vector<1x16xf32>
    %2 = arith.mulf %0, %0 : vector<1x16x256xf32>
    %cst_2 = arith.constant dense<0.000000e+00> : vector<1x16xf32>
    %3 = vector.multi_reduction <add>, %2, %cst_2 [2] : vector<1x16x256xf32> to vector<1x16xf32>
    %c0_3 = arith.constant 0 : index
    %c0_4 = arith.constant 0 : index
    %4 = vector.load %arg4[%c0_3, %c0_4] : memref<16x16xf32, #tpu.memory_space<vmem>>, vector<16x16xf32>
    %cst_5 = arith.constant dense<0.000000e+00> : vector<1x16xf32>
    %5 = tpu.matmul %1, %4, %cst_5 {dimension_numbers = #tpu.dot_dimension_numbers<[1], [0], [0], [1], [0, 0, 1, 1], [], []>} : vector<1x16xf32>, vector<16x16xf32>, vector<1x16xf32> -> vector<1x16xf32>
    %cst_6 = arith.constant dense<0.000000e+00> : vector<1x16xf32>
    %6 = tpu.matmul %3, %4, %cst_6 {dimension_numbers = #tpu.dot_dimension_numbers<[1], [0], [0], [1], [0, 0, 1, 1], [], []>} : vector<1x16xf32>, vector<16x16xf32>, vector<1x16xf32> -> vector<1x16xf32>
    %7 = arith.mulf %5, %5 : vector<1x16xf32>
    %8 = arith.subf %6, %7 : vector<1x16xf32>
    %cst_7 = arith.constant 0.000000e+00 : f32
    %9 = vector.broadcast %cst_7 : f32 to vector<1x16xf32>
    %10 = arith.maximumf %8, %9 : vector<1x16xf32>
    %cst_8 = arith.constant 9.99999974E-6 : f32
    %11 = vector.broadcast %cst_8 : f32 to vector<1x16xf32>
    %12 = arith.addf %10, %11 : vector<1x16xf32>
    %13 = math.rsqrt %12 : vector<1x16xf32>
    %c0_9 = arith.constant 0 : index
    %c0_10 = arith.constant 0 : index
    %14 = vector.load %arg2[%c0_9, %c0_10] : memref<1x16xf32, #tpu.memory_space<vmem>>, vector<1x16xf32>
    %c0_11 = arith.constant 0 : index
    %c0_12 = arith.constant 0 : index
    %15 = vector.load %arg3[%c0_11, %c0_12] : memref<1x16xf32, #tpu.memory_space<vmem>>, vector<1x16xf32>
    %16 = arith.mulf %13, %14 : vector<1x16xf32>
    %17 = arith.mulf %5, %16 : vector<1x16xf32>
    %18 = arith.subf %15, %17 : vector<1x16xf32>
    %19 = vector.shape_cast %16 : vector<1x16xf32> to vector<1x16x1xf32>
    %20 = vector.broadcast %19 : vector<1x16x1xf32> to vector<1x16x256xf32>
    %21 = arith.mulf %0, %20 : vector<1x16x256xf32>
    %22 = vector.shape_cast %18 : vector<1x16xf32> to vector<1x16x1xf32>
    %23 = vector.broadcast %22 : vector<1x16x1xf32> to vector<1x16x256xf32>
    %24 = arith.addf %21, %23 : vector<1x16x256xf32>
    %c0_13 = arith.constant 0 : index
    %c0_14 = arith.constant 0 : index
    %c0_15 = arith.constant 0 : index
    %25 = vector.load %arg5[%c0_13, %c0_14, %c0_15] : memref<1x16x256xf32, #tpu.memory_space<vmem>>, vector<1x16x256xf32>
    tpu.vector_store %arg5[%c0_13, %c0_14, %c0_15], %24 {strides = array<i32>} : memref<1x16x256xf32, #tpu.memory_space<vmem>>, vector<1x16x256xf32>,
    return
  }
  func.func @transform_0(%arg0: i32) -> (i32, i32, i32) {
    %c0_i32 = arith.constant 0 : i32
    %c0_i32_0 = arith.constant 0 : i32
    %c0_i32_1 = arith.constant 0 : i32
    return %arg0, %c0_i32, %c0_i32_0 : i32, i32, i32
  }
  func.func @transform_1(%arg0: i32) -> (i32, i32) {
    %c0_i32 = arith.constant 0 : i32
    %c0_i32_0 = arith.constant 0 : i32
    %c0_i32_1 = arith.constant 0 : i32
    return %c0_i32, %c0_i32_0 : i32, i32
  }
  func.func @transform_2(%arg0: i32) -> (i32, i32) {
    %c0_i32 = arith.constant 0 : i32
    %c0_i32_0 = arith.constant 0 : i32
    %c0_i32_1 = arith.constant 0 : i32
    return %c0_i32, %c0_i32_0 : i32, i32
  }
  func.func @transform_3(%arg0: i32) -> (i32, i32) {
    %c0_i32 = arith.constant 0 : i32
    %c0_i32_0 = arith.constant 0 : i32
    %c0_i32_1 = arith.constant 0 : i32
    return %c0_i32, %c0_i32_0 : i32, i32
  }
  func.func @transform_4(%arg0: i32) -> (i32, i32, i32) {
    %c0_i32 = arith.constant 0 : i32
    %c0_i32_0 = arith.constant 0 : i32
    %c0_i32_1 = arith.constant 0 : i32
    return %arg0, %c0_i32, %c0_i32_0 : i32, i32, i32
  }
}

</mosaic_0001>

<llo_original>
// kernel: tpu_custom_call.1
$region0: #{tpu_custom_call.1}
  #allocation0 [shape = 'u32[]', space=smem, size = 0x4, offset = 0x4, fixed_abs, tag = 'smem constant byte address 0x4 - core index']
  #allocation1 [shape = 'u32[72,128]{1,0:T(1,128)}', space=vmem, size = 0x9000, scoped, tag = 'internal scratch']
  %s0 = inlined_call_operand.hbm [shape: f32[2,16,256], index: 0, kind: input, shape index: {}]
  %s1 = inlined_call_operand.hbm [shape: f32[1,16], index: 1, kind: input, shape index: {}]
  %s2 = inlined_call_operand.vmem [shape: f32[1,16], index: 2, kind: input, shape index: {}]
  %s3 = inlined_call_operand.hbm [shape: f32[16,16], index: 3, kind: input, shape index: {}]
  %s4 = inlined_call_operand.hbm [shape: f32[2,16,256], index: 4, kind: output, shape index: {}]
  %s5 = sld [smem:[#allocation0]]
  $region61: #{tpu_custom_call.1} parent=0
    _
  %s7 = ssub.s32 1, %s5
  %s8 = scalar_select 0, %s7, %s5
  $region1: #{tpu_custom_call.1} parent=0
    #allocation2 [shape = 'u8[32768]{0}', space=vmem, size = 0x8000, scoped, tag = 'input window, operand 0']
    #allocation3 [shape = 's32[2]{0}', space=sflag, size = 0x8, scoped, tag = 'scoped memory for tpu_custom_call.1']
    #allocation4 [shape = 's32[2]{0}', space=sflag, size = 0x8, scoped, tag = 'scoped memory for tpu_custom_call.1']
    #allocation5 [shape = 'u8[512]{0}', space=vmem, size = 0x400, scoped, tag = 'input window, operand 1, single buffered']
    #allocation6 [shape = 's32[1]{0}', space=sflag, size = 0x4, scoped, tag = 'scoped memory for tpu_custom_call.1']
    #allocation7 [shape = 'u8[8192]{0}', space=vmem, size = 0x2000, scoped, tag = 'input window, operand 3, single buffered']
    #allocation8 [shape = 'u8[32768]{0}', space=vmem, size = 0x8000, scoped, tag = 'output window, operand 0']
    %9 = vsyncpa [#allocation3], 0
    %s10 = scalar_lea.sflag [#allocation3], 1
    %11 = vsyncpa %s10, 0
    %12 = vsyncpa [#allocation6], 0
    %13 = vsyncpa [#allocation4], 0
    %s14 = scalar_lea.sflag [#allocation4], 1
    %15 = vsyncpa %s14, 0
    loop: start=0, step=1, limit=4
    $region2: #{tpu_custom_call.1} parent=1 // loop_pre_header
      _
    $region3: #{tpu_custom_call.1} parent=1 // loop_header
      %s17 = sphi 0, %s21
      %p18 = scmp.ge.s32.totalorder %s17, 4
      %s27 = sphi 0, %s29
      %s30 = sphi 0, %s27
      %s31 = sphi 0, %s30
      %s47 = sphi 0, %s31
      %s51 = sphi 0, %s51
      %s53 = sphi 0, %s51
      %s54 = sphi 0, %s53
      %s68 = sphi 0, %s54
      %s72 = sphi 0, %s72
      %s74 = sphi 0, %s72
      %s75 = sphi 0, %s74
      %s89 = sphi 0, %s75
      %s93 = sphi 0, %s93
      %s95 = sphi 0, %s93
      %s96 = sphi 0, %s95
      %s110 = sphi 0, %s96
      %s116 = sphi 0, %s118
      %s119 = sphi 0, %s116
      %s120 = sphi 0, %s119
      %s136 = sphi 0, %s120
    $region4: #{tpu_custom_call.1} parent=1 // loop_header_branch
      %20 = sbr.rel (%p18) target = $region8
    $region5: #{tpu_custom_call.1} parent=1 // loop_body
      %s22 = ssub.s32 %s17, 1
      %s23 = ssub.s32 %s17, 2
      %s24 = sadd.s32 %s17, 1
      %s25 = ssub.s32 %s17, %s24
      %p26 = scmp.eq.s32.totalorder %s25, 0
      %s28 = sadd.s32 %s27, 1
      %s29 = scalar_select %p26, %s27, %s28
      %p32 = pneg %p26
      %p33 = scmp.eq.s32.totalorder %s17, 1
      %p34 = por %p32, %p33
      %p35 = scmp.ne.s32.totalorder %s27, %s30
      %p36 = scmp.eq.s32.totalorder %s17, 0
      %p37 = por %p35, %p36
      %p38 = scmp.ne.s32.totalorder %s27, %s30
      %p39 = scmp.eq.s32.totalorder %s22, 1
      %p40 = por %p38, %p39
      %p41 = scmp.ne.s32.totalorder %s30, %s31
      %p42 = scmp.eq.s32.totalorder %s22, 0
      %p43 = por %p41, %p42
      %p44 = scmp.ne.s32.totalorder %s30, %s31
      %p45 = scmp.eq.s32.totalorder %s23, 1
      %p46 = por %p44, %p45
      %p48 = scmp.ne.s32.totalorder %s31, %s47
      %p49 = scmp.eq.s32.totalorder %s23, 0
      %p50 = por %p48, %p49
      %s52 = sadd.s32 %s51, 1
      %p55 = scmp.eq.s32.totalorder %s17, 1
      %p56 = scmp.ne.s32.totalorder %s51, %s53
      %p57 = scmp.eq.s32.totalorder %s17, 0
      %p58 = por %p56, %p57
      %p59 = scmp.ne.s32.totalorder %s51, %s53
      %p60 = scmp.eq.s32.totalorder %s22, 1
      %p61 = por %p59, %p60
      %p62 = scmp.ne.s32.totalorder %s53, %s54
      %p63 = scmp.eq.s32.totalorder %s22, 0
      %p64 = por %p62, %p63
      %p65 = scmp.ne.s32.totalorder %s53, %s54
      %p66 = scmp.eq.s32.totalorder %s23, 1
      %p67 = por %p65, %p66
      %p69 = scmp.ne.s32.totalorder %s54, %s68
      %p70 = scmp.eq.s32.totalorder %s23, 0
      %p71 = por %p69, %p70
      %s73 = sadd.s32 %s72, 1
      %p76 = scmp.eq.s32.totalorder %s17, 1
      %p77 = scmp.ne.s32.totalorder %s72, %s74
      %p78 = scmp.eq.s32.totalorder %s17, 0
      %p79 = por %p77, %p78
      %p80 = scmp.ne.s32.totalorder %s72, %s74
      %p81 = scmp.eq.s32.totalorder %s22, 1
      %p82 = por %p80, %p81
      %p83 = scmp.ne.s32.totalorder %s74, %s75
      %p84 = scmp.eq.s32.totalorder %s22, 0
      %p85 = por %p83, %p84
      %p86 = scmp.ne.s32.totalorder %s74, %s75
      %p87 = scmp.eq.s32.totalorder %s23, 1
      %p88 = por %p86, %p87
      %p90 = scmp.ne.s32.totalorder %s75, %s89
      %p91 = scmp.eq.s32.totalorder %s23, 0
      %p92 = por %p90, %p91
      %s94 = sadd.s32 %s93, 1
      %p97 = scmp.eq.s32.totalorder %s17, 1
      %p98 = scmp.ne.s32.totalorder %s93, %s95
      %p99 = scmp.eq.s32.totalorder %s17, 0
      %p100 = por %p98, %p99
      %p101 = scmp.ne.s32.totalorder %s93, %s95
      %p102 = scmp.eq.s32.totalorder %s22, 1
      %p103 = por %p101, %p102
      %p104 = scmp.ne.s32.totalorder %s95, %s96
      %p105 = scmp.eq.s32.totalorder %s22, 0
      %p106 = por %p104, %p105
      %p107 = scmp.ne.s32.totalorder %s95, %s96
      %p108 = scmp.eq.s32.totalorder %s23, 1
      %p109 = por %p107, %p108
      %p111 = scmp.ne.s32.totalorder %s96, %s110
      %p112 = scmp.eq.s32.totalorder %s23, 0
      %p113 = por %p111, %p112
      %s114 = ssub.s32 %s17, %s24
      %p115 = scmp.eq.s32.totalorder %s114, 0
      %s117 = sadd.s32 %s116, 1
      %s118 = scalar_select %p115, %s116, %s117
      %p121 = pneg %p115
      %p122 = scmp.eq.s32.totalorder %s17, 1
      %p123 = por %p121, %p122
      %p124 = scmp.ne.s32.totalorder %s116, %s119
      %p125 = scmp.eq.s32.totalorder %s17, 0
      %p126 = por %p124, %p125
      %p127 = scmp.ne.s32.totalorder %s116, %s119
      %p128 = scmp.eq.s32.totalorder %s22, 1
      %p129 = por %p127, %p128
      %p130 = scmp.ne.s32.totalorder %s119, %s120
      %p131 = scmp.eq.s32.totalorder %s22, 0
      %p132 = por %p130, %p131
      %p133 = scmp.ne.s32.totalorder %s119, %s120
      %p134 = scmp.eq.s32.totalorder %s23, 1
      %p135 = por %p133, %p134
      %p137 = scmp.ne.s32.totalorder %s120, %s136
      %p138 = scmp.eq.s32.totalorder %s23, 0
      %p139 = por %p137, %p138
      %p140 = scmp.le.s32.totalorder 1, %s17
      %p141 = scmp.lt.s32.totalorder %s17, 3
      %p142 = pnand %p140, %p141
      %p143 = pneg %p142
      // Predicated region
      $region9: #{tpu_custom_call.1} parent=5 // pred_check
        _
      $region10: #{tpu_custom_call.1} parent=5 // pred_check_branch
        %145 = sbr.rel (%p142) target = $region12
      $region11: #{tpu_custom_call.1} parent=5 // pred_region
        %s146 = ssub.s32 %s17, 1
        // Predicated region
        $region13: #{tpu_custom_call.1} parent=11 // pred_check
          %p147 = pneg %p64
        $region14: #{tpu_custom_call.1} parent=11 // pred_check_branch
          %149 = sbr.rel (%p147) target = $region16
        $region15: #{tpu_custom_call.1} parent=11 // pred_region
          %151 = vsyncadd [#allocation6], 0
          %s153 = sshll.u32 %s1, 4
          %s154 = int_to_ptr.hbm [resolvable:$true] %s153
          %s155 = sshll.u32 [#allocation5], 4
          %s156 = int_to_ptr.vmem [resolvable:$true] %s155
          %158 = dma.hbm_to_vmem [thread:$0]  %s154, 16, %s156, [#allocation6]
        $region16: #{tpu_custom_call.1} parent=11 // pred_fallthru
          _
        // Predicated region
        $region17: #{tpu_custom_call.1} parent=11 // pred_check
          %p159 = pneg %p85
        $region18: #{tpu_custom_call.1} parent=11 // pred_check_branch
          %161 = sbr.rel (%p159) target = $region20
        $region19: #{tpu_custom_call.1} parent=11 // pred_region
          _
        $region20: #{tpu_custom_call.1} parent=11 // pred_fallthru
          _
        // Predicated region
        $region21: #{tpu_custom_call.1} parent=11 // pred_check
          %p162 = pneg %p106
        $region22: #{tpu_custom_call.1} parent=11 // pred_check_branch
          %164 = sbr.rel (%p162) target = $region24
        $region23: #{tpu_custom_call.1} parent=11 // pred_region
          %166 = vsyncadd [#allocation6], 0
          %s167 = sshll.u32 %s3, 4
          %s168 = int_to_ptr.hbm [resolvable:$true] %s167
          %s169 = sshll.u32 [#allocation7], 4
          %s170 = int_to_ptr.vmem [resolvable:$true] %s169
          %175 = dma.hbm_to_vmem [thread:$0]  %s168, 256, %s170, [#allocation6], 128, 128, 8
        $region24: #{tpu_custom_call.1} parent=11 // pred_fallthru
          _
      $region12: #{tpu_custom_call.1} parent=5 // pred_fallthru
        _
      %p176 = scmp.lt.s32.totalorder %s17, 2
      // Predicated region
      $region25: #{tpu_custom_call.1} parent=5 // pred_check
        %p177 = pneg %p176
      $region26: #{tpu_custom_call.1} parent=5 // pred_check_branch
        %179 = sbr.rel (%p177) target = $region28
      $region27: #{tpu_custom_call.1} parent=5 // pred_region
        // Predicated region
        $region29: #{tpu_custom_call.1} parent=27 // pred_check
          %p180 = pneg %p37
        $region30: #{tpu_custom_call.1} parent=27 // pred_check_branch
          %182 = sbr.rel (%p180) target = $region32
        $region31: #{tpu_custom_call.1} parent=27 // pred_region
          %s183 = sand.u32 %s27, 1
          %s184 = scalar_lea.sflag [#allocation3], %s183
          %s185 = sand.u32 %s27, 1
          %s186 = smul.addr %s185, 32
          %s187 = scalar_lea.vmem [#allocation2], %s186
          %189 = vsyncadd %s184, 0
          %s190 = smul.addr %s17, 4
          %s191 = smul.addr %s190, 8
          %s192 = scalar_lea.hbm %s0, %s191
          %s193 = sshll.u32 %s192, 4
          %s194 = int_to_ptr.hbm [resolvable:$true] %s193
          %s195 = sshll.u32 %s187, 4
          %s196 = int_to_ptr.vmem [resolvable:$true] %s195
          %201 = dma.hbm_to_vmem [thread:$0]  %s194, 512, %s196, %s184, 256, 256, 16
        $region32: #{tpu_custom_call.1} parent=27 // pred_fallthru
          _
      $region28: #{tpu_custom_call.1} parent=5 // pred_fallthru
        _
      %p202 = scmp.le.s32.totalorder 1, %s17
      %p203 = scmp.lt.s32.totalorder %s17, 3
      %p204 = pnand %p202, %p203
      %p205 = pneg %p204
      // Predicated region
      $region33: #{tpu_custom_call.1} parent=5 // pred_check
        _
      $region34: #{tpu_custom_call.1} parent=5 // pred_check_branch
        %207 = sbr.rel (%p204) target = $region36
      $region35: #{tpu_custom_call.1} parent=5 // pred_region
        %s208 = ssub.s32 %s17, 1
        %s209 = sand.u32 %s30, 1
        %s210 = scalar_lea.sflag [#allocation3], %s209
        %s211 = sand.u32 %s30, 1
        %s212 = smul.addr %s211, 32
        %s213 = scalar_lea.vmem [#allocation2], %s212
        // Predicated region
        $region37: #{tpu_custom_call.1} parent=35 // pred_check
          %p214 = pneg %p43
        $region38: #{tpu_custom_call.1} parent=35 // pred_check_branch
          %216 = sbr.rel (%p214) target = $region40
        $region39: #{tpu_custom_call.1} parent=35 // pred_region
          %218 = dma.done %s210, 512
        $region40: #{tpu_custom_call.1} parent=35 // pred_fallthru
          _
        // Predicated region
        $region41: #{tpu_custom_call.1} parent=35 // pred_check
          %p219 = pneg %p64
        $region42: #{tpu_custom_call.1} parent=35 // pred_check_branch
          %221 = sbr.rel (%p219) target = $region44
        $region43: #{tpu_custom_call.1} parent=35 // pred_region
          %223 = dma.done [#allocation6], 16
        $region44: #{tpu_custom_call.1} parent=35 // pred_fallthru
          _
        // Predicated region
        $region45: #{tpu_custom_call.1} parent=35 // pred_check
          %p224 = pneg %p106
        $region46: #{tpu_custom_call.1} parent=35 // pred_check_branch
          %226 = sbr.rel (%p224) target = $region48
        $region47: #{tpu_custom_call.1} parent=35 // pred_region
          %228 = dma.done [#allocation6], 256
        $region48: #{tpu_custom_call.1} parent=35 // pred_fallthru
          _
        %s229 = sand.u32 %s30, 1
        %s230 = scalar_lea.sflag [#allocation3], %s229
        %s231 = sand.u32 %s30, 1
        %s232 = smul.addr %s231, 32
        %s233 = scalar_lea.vmem [#allocation2], %s232
        %p234 = pneg %p43
        %p235 = pneg %p40
        %p236 = pneg %p64
        %p237 = pneg %p61
        %p238 = pneg %p85
        %p239 = pneg %p82
        %p240 = pneg %p106
        %p241 = pneg %p103
        %p242 = pneg %p132
        %p243 = pneg %p129
        %s244 = sand.u32 %s119, 1
        %s245 = scalar_lea.sflag [#allocation4], %s244
        %s246 = sand.u32 %s119, 1
        %s247 = smul.addr %s246, 32
        %s248 = scalar_lea.vmem [#allocation8], %s247
        %v249 = vld [vmem:[%s213] sm:$0xff]
        %v250 = vld [vmem:[%s213 + $0x8] sm:$0xff]
        %v251 = vld [vmem:[%s213 + $0x10] sm:$0xff]
        %v252 = vld [vmem:[%s213 + $0x18] sm:$0xff]
        %v253 = vadd.f32 %v249, %v250
        %254 = vadd.xlane.f32.xlu0 %v253
        %v255 = vpop.xlane.xlu0 %254
        %v256 = vadd.f32 %v251, %v252
        %257 = vadd.xlane.f32.xlu0 %v256
        %v258 = vpop.xlane.xlu0 %257
        %v259 = vmul.f32 %v249, %v249
        %v260 = vmul.f32 %v250, %v250
        %v261 = vmul.f32 %v251, %v251
        %v262 = vmul.f32 %v252, %v252
        %v263 = vadd.f32 %v259, %v260
        %264 = vadd.xlane.f32.xlu0 %v263
        %v265 = vpop.xlane.xlu0 %264
        %v266 = vadd.f32 %v261, %v262
        %267 = vadd.xlane.f32.xlu0 %v266
        %v268 = vpop.xlane.xlu0 %267
        %v269 = vld [vmem:[#allocation7] sm:$0xff]
        %v270 = vld [vmem:[#allocation7 + $0x8] sm:$0xff]
        %v273 = vlaneseq
        %v274 = vand.u32 %v273, 127
        %v275 = vperm.slane %v255, %v274
        %v276 = vadd.s32 %v274, 4294967288
        %v277 = vperm.slane %v258, %v276
        %vm278 = vcmask 130112
        %v279 = vsel %vm278, %v277, %v275
        %vm280 = vcmask 130048
        %v281 = vsel %vm280, %v279, 0
        %283 = vmatpush.msra.mxu0 0.0
        %284 = vmatpush.msra.mxu0 0.0
        %285 = vmatpush.msra.mxu0 0.0
        %286 = vmatpush.msra.mxu0 0.0
        %287 = vmatpush.msra.mxu0 0.0
        %288 = vmatpush.msra.mxu0 0.0
        %289 = vmatpush.msra.mxu0 0.0
        %290 = vmatpush.msra.mxu0 0.0
        %291 = vmatpush.msra.mxu0 0.0
        %292 = vmatpush.msra.mxu0 0.0
        %293 = vmatpush.msra.mxu0 0.0
        %294 = vmatpush.msra.mxu0 0.0
        %295 = vmatpush.msra.mxu0 0.0
        %296 = vmatpush.msra.mxu0 0.0
        %297 = vmatpush.msra.mxu0 %v270
        %298 = vmatpush.msra.mxu0 %v269
        %299 = vmatmul.f32.gmra.mxu0 %v281
        %v300 = vpop.f32.mrf.mxu0
        %v301 = vadd.f32 0.0, %v300
        %302 = vdwg.mxu0
        %v305 = vperm.slane %v265, %v274
        %v306 = vperm.slane %v268, %v276
        %v307 = vsel %vm278, %v306, %v305
        %v308 = vsel %vm280, %v307, 0
        %310 = vmatpush.msra.mxu0 0.0
        %311 = vmatpush.msra.mxu0 0.0
        %312 = vmatpush.msra.mxu0 0.0
        %313 = vmatpush.msra.mxu0 0.0
        %314 = vmatpush.msra.mxu0 0.0
        %315 = vmatpush.msra.mxu0 0.0
        %316 = vmatpush.msra.mxu0 0.0
        %317 = vmatpush.msra.mxu0 0.0
        %318 = vmatpush.msra.mxu0 0.0
        %319 = vmatpush.msra.mxu0 0.0
        %320 = vmatpush.msra.mxu0 0.0
        %321 = vmatpush.msra.mxu0 0.0
        %322 = vmatpush.msra.mxu0 0.0
        %323 = vmatpush.msra.mxu0 0.0
        %324 = vmatpush.msra.mxu0 %v270
        %325 = vmatpush.msra.mxu0 %v269
        %326 = vmatmul.f32.gmra.mxu0 %v308
        %v327 = vpop.f32.mrf.mxu0
        %v328 = vadd.f32 0.0, %v327
        %329 = vdwg.mxu0
        %v330 = vmul.f32 %v301, %v301
        %v331 = vsub.f32 %v328, %v330
        %v332 = vmax.f32 %v331, 0.0
        %v333 = vadd.f32 %v332, 1e-05
        %v334 = vrsqrt.pop %v333
        %v335 = vmul.f32 %v334, %v333
        %v336 = vmul.f32 %v335, %v334
        %v337 = vmul.f32 0.5, %v336
        %v338 = vsub.f32 1.5, %v337
        %v339 = vmul.f32 %v334, %v338
        %vm340 = vweird.f32 %v333
        %vm341 = vweird.f32 %v334
        %vm342 = vmor %vm340, %vm341
        %v343 = vsel %vm342, %v334, %v339
        %v344 = vld [vmem:[#allocation5] sm:$0x1]
        %v345 = vld [vmem:[%s2] sm:$0x1]
        %v346 = vmul.f32 %v343, %v344
        %v347 = vmul.f32 %v301, %v346
        %v348 = vsub.f32 %v345, %v347
        %v349 = vperm.slane %v346, 0
        %v350 = vlaneseq
        %v351 = vshrl.u32 %v350, 7
        %353 = vset.pattern.permute.xlu0 %v351
        %354 = vperm.xlu0 %353, %v349
        %v355 = vpop.permute.xlu0 %354
        %v356 = vlaneseq
        %v357 = vshrl.u32 %v356, 7
        %v358 = vadd.s32 %v357, 8
        %359 = vset.pattern.permute.xlu0 %v358
        %360 = vperm.xlu0 %359, %v349
        %v361 = vpop.permute.xlu0 %360
        %v362 = vmul.f32 %v249, %v355
        %v363 = vmul.f32 %v250, %v355
        %v364 = vmul.f32 %v251, %v361
        %v365 = vmul.f32 %v252, %v361
        %v366 = vperm.slane %v348, 0
        %v367 = vlaneseq
        %v368 = vshrl.u32 %v367, 7
        %370 = vset.pattern.permute.xlu0 %v368
        %371 = vperm.xlu0 %370, %v366
        %v372 = vpop.permute.xlu0 %371
        %v373 = vlaneseq
        %v374 = vshrl.u32 %v373, 7
        %v375 = vadd.s32 %v374, 8
        %376 = vset.pattern.permute.xlu0 %v375
        %377 = vperm.xlu0 %376, %v366
        %v378 = vpop.permute.xlu0 %377
        %v379 = vadd.f32 %v362, %v372
        %v380 = vadd.f32 %v363, %v372
        %v381 = vadd.f32 %v364, %v378
        %v382 = vadd.f32 %v365, %v378
        %383 = vst [vmem:[%s248] sm:$0xff] %v379
        %384 = vst [vmem:[%s248 + $0x8] sm:$0xff] %v380
        %385 = vst [vmem:[%s248 + $0x10] sm:$0xff] %v381
        %386 = vst [vmem:[%s248 + $0x18] sm:$0xff] %v382
        %s387 = sand.u32 %s119, 1
        %s388 = scalar_lea.sflag [#allocation4], %s387
        %s389 = sand.u32 %s119, 1
        %s390 = smul.addr %s389, 32
        %s391 = scalar_lea.vmem [#allocation8], %s390
        // Predicated region
        $region49: #{tpu_custom_call.1} parent=35 // pred_check
          %p392 = pneg %p129
        $region50: #{tpu_custom_call.1} parent=35 // pred_check_branch
          %394 = sbr.rel (%p392) target = $region52
        $region51: #{tpu_custom_call.1} parent=35 // pred_region
          %396 = vsyncadd %s388, 0
          %s397 = smul.addr %s22, 4
          %s398 = smul.addr %s397, 8
          %s399 = scalar_lea.hbm %s4, %s398
          %s400 = sshll.u32 %s391, 4
          %s401 = int_to_ptr.vmem [resolvable:$true] %s400
          %s402 = sshll.u32 %s399, 4
          %s403 = int_to_ptr.hbm [resolvable:$true] %s402
          %408 = dma.vmem_to_hbm [thread:$0]  %s401, 512, %s403, %s388, 256, 256, 16
        $region52: #{tpu_custom_call.1} parent=35 // pred_fallthru
          _
      $region36: #{tpu_custom_call.1} parent=5 // pred_fallthru
        _
      %p409 = scmp.le.s32.totalorder 2, %s17
      // Predicated region
      $region53: #{tpu_custom_call.1} parent=5 // pred_check
        %p410 = pneg %p409
      $region54: #{tpu_custom_call.1} parent=5 // pred_check_branch
        %412 = sbr.rel (%p410) target = $region56
      $region55: #{tpu_custom_call.1} parent=5 // pred_region
        %s413 = ssub.s32 %s17, 2
        // Predicated region
        $region57: #{tpu_custom_call.1} parent=55 // pred_check
          %p414 = pneg %p135
        $region58: #{tpu_custom_call.1} parent=55 // pred_check_branch
          %416 = sbr.rel (%p414) target = $region60
        $region59: #{tpu_custom_call.1} parent=55 // pred_region
          %s417 = sand.u32 %s120, 1
          %s418 = scalar_lea.sflag [#allocation4], %s417
          %s419 = sand.u32 %s120, 1
          %s420 = smul.addr %s419, 32
          %s421 = scalar_lea.vmem [#allocation8], %s420
          %423 = dma.done %s418, 512
        $region60: #{tpu_custom_call.1} parent=55 // pred_fallthru
          _
      $region56: #{tpu_custom_call.1} parent=5 // pred_fallthru
        _
    $region6: #{tpu_custom_call.1} parent=1 // loop_footer
      %s21 = sadd.s32 1, %s17
    $region7: #{tpu_custom_call.1} parent=1 // loop_footer_branch
      %16 = sbr.rel target = $region3
    $region8: #{tpu_custom_call.1} parent=1 // loop_exit
      _
    %424 = vsyncpa [#allocation3], 1
    %s425 = scalar_lea.sflag [#allocation3], 1
    %426 = vsyncpa %s425, 1
    %427 = vsyncpa [#allocation6], 1
    %428 = vsyncpa [#allocation4], 1
    %s429 = scalar_lea.sflag [#allocation4], 1
    %430 = vsyncpa %s429, 1

</llo_original>
